<compile_context>
chip_gen: v7x
topology: tpu7x:2x2x1
jax: 0.10.0
libtpu: 0.0.40
codegen_flags: <defaults>
</compile_context>

<pallas_src>
import functools

import jax
import jax.numpy as jnp
from jax.experimental import pallas as pl
from jax.experimental.pallas import tpu as pltpu

LANE = 128     # vreg lane width
SUBLANE = 8    # f32 sublane count


def _round_up(n, m):
    return ((n + m - 1) // m) * m


# ---------------------------------------------------------------------------
# Fused kernel: (Linear -> ReLU) x L  ->  Dropout
# ---------------------------------------------------------------------------
def _deep_fused_kernel(*refs, num_layers, p):
    """refs = (seed_ref, x_ref, w0, b0, w1, b1, ..., o_ref).

    All refs are whole-array VMEM tiles (seed is an SMEM scalar); feature dims
    are pre-padded to multiples of 128 so every dot / store is lane-dense.
    """
    seed_ref = refs[0]
    x_ref = refs[1]
    o_ref = refs[-1]
    wb = refs[2:-1]

    h = x_ref[...]
    for i in range(num_layers):
        w = wb[2 * i][...]
        b = wb[2 * i + 1][...]          # (1, N) — broadcast once, no inner loop
        h = jnp.dot(h, w, preferred_element_type=jnp.float32) + b
        h = jnp.maximum(h, 0.0)

    if p >= 1.0:
        h = jnp.zeros_like(h)
    elif p > 0.0:
        # Counter-based hash dropout mask (portable: integer VPU ops only).
        rows = jax.lax.broadcasted_iota(jnp.int32, h.shape, 0)
        cols = jax.lax.broadcasted_iota(jnp.int32, h.shape, 1)
        idx = (rows * h.shape[1] + cols).astype(jnp.uint32)
        seed = seed_ref[0].astype(jnp.uint32)
        r = idx * jnp.uint32(0x9E3779B1) + seed * jnp.uint32(0x85EBCA77)
        r = r ^ (r >> 16)
        r = r * jnp.uint32(0x7FEB352D)
        r = r ^ (r >> 15)
        r = r * jnp.uint32(0x846CA68B)
        r = r ^ (r >> 16)
        # Integer-threshold compare on the top 24 bits (no float convert/mul).
        top24 = (r >> 8).astype(jnp.int32)
        thresh = jnp.int32(min(int(round(p * (1 << 24))), 1 << 24))
        keep = top24 >= thresh
        scale = jnp.float32(1.0 / (1.0 - p))
        h = jnp.where(keep, h * scale, 0.0)

    o_ref[...] = h.astype(o_ref.dtype)


# ---------------------------------------------------------------------------
# Host-side wrappers
# ---------------------------------------------------------------------------
def pad_deep_params(params):
    """Zero-pad (in, out) weights / biases to 128-lane multiples. Do once at init."""
    padded = []
    for w, b in params:
        k, n = w.shape
        kp, np_ = _round_up(k, LANE), _round_up(n, LANE)
        wp = jnp.zeros((kp, np_), w.dtype).at[:k, :n].set(w)
        bp = jnp.zeros((1, np_), b.dtype).at[0, :n].set(b)
        padded.append((wp, bp))
    return padded


def deep_forward(x, padded_params, dropout_p, seed, out_features):
    """Fused forward for the `Deep` module. x: (B, d_in) f32."""
    B, d_in = x.shape
    d_in_pad = padded_params[0][0].shape[0]
    d_out_pad = padded_params[-1][0].shape[1]
    num_layers = len(padded_params)

    # Pad batch to a sublane multiple and input features to the padded K slab.
    b_pad = _round_up(B, SUBLANE)
    x_pad = jnp.zeros((b_pad, d_in_pad), x.dtype).at[:B, :d_in].set(x)

    seed_arr = jnp.asarray([seed], dtype=jnp.int32)

    flat_wb = []
    in_specs = [
        pl.BlockSpec(memory_space=pltpu.MemorySpace.SMEM),   # seed scalar
        pl.BlockSpec(memory_space=pltpu.MemorySpace.VMEM),   # x (whole array)
    ]
    for w, b in padded_params:
        flat_wb += [w, b]
        in_specs += [
            pl.BlockSpec(memory_space=pltpu.MemorySpace.VMEM),
            pl.BlockSpec(memory_space=pltpu.MemorySpace.VMEM),
        ]

    kernel = functools.partial(
        _deep_fused_kernel, num_layers=num_layers, p=float(dropout_p)
    )

    out_pad = pl.pallas_call(
        kernel,
        out_shape=jax.ShapeDtypeStruct((b_pad, d_out_pad), x.dtype),
        in_specs=in_specs,
        out_specs=pl.BlockSpec(memory_space=pltpu.MemorySpace.VMEM),
    )(seed_arr, x_pad, *flat_wb)

    return out_pad[:B, :out_features]


def init_deep_params(key, hidden_layers):
    """Deterministic param init matching nn.Linear shapes (stored transposed)."""
    params = []
    for fan_in, fan_out in zip(hidden_layers[:-1], hidden_layers[1:]):
        key, kw, kb = jax.random.split(key, 3)
        bound = 1.0 / (fan_in ** 0.5)  # same bound as PyTorch default init
        w = jax.random.uniform(kw, (fan_in, fan_out), jnp.float32, -bound, bound)
        b = jax.random.uniform(kb, (fan_out,), jnp.float32, -bound, bound)
        params.append((w, b))
    return params


if __name__ == "__main__":
    config = {"deep_dropout": 0.5}
    hidden_layers = [32, 64, 48, 16]   # Linear(32->64), Linear(64->48), Linear(48->16)
    batch = 8

    key = jax.random.PRNGKey(0)
    key, kx = jax.random.split(key)
    x = jax.random.normal(kx, (batch, hidden_layers[0]), dtype=jnp.float32)

    params = init_deep_params(key, hidden_layers)
    padded_params = pad_deep_params(params)   # done once, reused every forward

    # 1) Correctness check with dropout disabled against a pure-JAX reference.
    ref = x
    for w, b in params:
        ref = jnp.maximum(ref @ w + b, 0.0)
    out_nodrop = deep_forward(x, padded_params, 0.0, seed=0,
                              out_features=hidden_layers[-1])
    out_nodrop = jax.block_until_ready(out_nodrop)
    assert out_nodrop.shape == (batch, hidden_layers[-1])
    assert jnp.allclose(out_nodrop, ref, atol=1e-5, rtol=1e-5)

    # 2) Full forward with dropout (training semantics: zero w.p. p, scale 1/(1-p)).
    out = deep_forward(x, padded_params, config["deep_dropout"], seed=1234,
                       out_features=hidden_layers[-1])
    out = jax.block_until_ready(out)

    assert out.shape == (batch, hidden_layers[-1])
    assert out.dtype == jnp.float32
    assert bool(jnp.all(jnp.isfinite(out)))
    print("KERNEL_OK")
</pallas_src>

<mosaic_0001>
module attributes {stable_mosaic.version = 11 : i64} {
  func.func @_deep_fused_kernel(%arg0: memref<1xi32, #tpu.memory_space<smem>>, %arg1: memref<8x128xf32, #tpu.memory_space<vmem>>, %arg2: memref<128x128xf32, #tpu.memory_space<vmem>>, %arg3: memref<1x128xf32, #tpu.memory_space<vmem>>, %arg4: memref<128x128xf32, #tpu.memory_space<vmem>>, %arg5: memref<1x128xf32, #tpu.memory_space<vmem>>, %arg6: memref<128x128xf32, #tpu.memory_space<vmem>>, %arg7: memref<1x128xf32, #tpu.memory_space<vmem>>, %arg8: memref<8x128xf32, #tpu.memory_space<vmem>>) attributes {dimension_semantics = [], scalar_prefetch = 0 : i64, scratch_operands = 0 : i64, tpu.core_type = #tpu.core_type<tc>} {
    %c0 = arith.constant 0 : index
    %c0_0 = arith.constant 0 : index
    %0 = vector.load %arg1[%c0, %c0_0] : memref<8x128xf32, #tpu.memory_space<vmem>>, vector<8x128xf32>
    %c0_1 = arith.constant 0 : index
    %c0_2 = arith.constant 0 : index
    %1 = vector.load %arg2[%c0_1, %c0_2] : memref<128x128xf32, #tpu.memory_space<vmem>>, vector<128x128xf32>
    %c0_3 = arith.constant 0 : index
    %c0_4 = arith.constant 0 : index
    %2 = vector.load %arg3[%c0_3, %c0_4] : memref<1x128xf32, #tpu.memory_space<vmem>>, vector<1x128xf32>
    %cst = arith.constant dense<0.000000e+00> : vector<8x128xf32>
    %3 = tpu.matmul %0, %1, %cst {dimension_numbers = #tpu.dot_dimension_numbers<[1], [0], [0], [1], [0, 0, 1, 1], [], []>} : vector<8x128xf32>, vector<128x128xf32>, vector<8x128xf32> -> vector<8x128xf32>
    %4 = vector.broadcast %2 : vector<1x128xf32> to vector<8x128xf32>
    %5 = arith.addf %3, %4 : vector<8x128xf32>
    %cst_5 = arith.constant 0.000000e+00 : f32
    %6 = vector.broadcast %cst_5 : f32 to vector<8x128xf32>
    %7 = arith.maximumf %5, %6 : vector<8x128xf32>
    %c0_6 = arith.constant 0 : index
    %c0_7 = arith.constant 0 : index
    %8 = vector.load %arg4[%c0_6, %c0_7] : memref<128x128xf32, #tpu.memory_space<vmem>>, vector<128x128xf32>
    %c0_8 = arith.constant 0 : index
    %c0_9 = arith.constant 0 : index
    %9 = vector.load %arg5[%c0_8, %c0_9] : memref<1x128xf32, #tpu.memory_space<vmem>>, vector<1x128xf32>
    %cst_10 = arith.constant dense<0.000000e+00> : vector<8x128xf32>
    %10 = tpu.matmul %7, %8, %cst_10 {dimension_numbers = #tpu.dot_dimension_numbers<[1], [0], [0], [1], [0, 0, 1, 1], [], []>} : vector<8x128xf32>, vector<128x128xf32>, vector<8x128xf32> -> vector<8x128xf32>
    %11 = vector.broadcast %9 : vector<1x128xf32> to vector<8x128xf32>
    %12 = arith.addf %10, %11 : vector<8x128xf32>
    %cst_11 = arith.constant 0.000000e+00 : f32
    %13 = vector.broadcast %cst_11 : f32 to vector<8x128xf32>
    %14 = arith.maximumf %12, %13 : vector<8x128xf32>
    %c0_12 = arith.constant 0 : index
    %c0_13 = arith.constant 0 : index
    %15 = vector.load %arg6[%c0_12, %c0_13] : memref<128x128xf32, #tpu.memory_space<vmem>>, vector<128x128xf32>
    %c0_14 = arith.constant 0 : index
    %c0_15 = arith.constant 0 : index
    %16 = vector.load %arg7[%c0_14, %c0_15] : memref<1x128xf32, #tpu.memory_space<vmem>>, vector<1x128xf32>
    %cst_16 = arith.constant dense<0.000000e+00> : vector<8x128xf32>
    %17 = tpu.matmul %14, %15, %cst_16 {dimension_numbers = #tpu.dot_dimension_numbers<[1], [0], [0], [1], [0, 0, 1, 1], [], []>} : vector<8x128xf32>, vector<128x128xf32>, vector<8x128xf32> -> vector<8x128xf32>
    %18 = vector.broadcast %16 : vector<1x128xf32> to vector<8x128xf32>
    %19 = arith.addf %17, %18 : vector<8x128xf32>
    %cst_17 = arith.constant 0.000000e+00 : f32
    %20 = vector.broadcast %cst_17 : f32 to vector<8x128xf32>
    %21 = arith.maximumf %19, %20 : vector<8x128xf32>
    %c0_18 = arith.constant 0 : index
    %c0_19 = arith.constant 0 : index
    %22 = vector.load %arg8[%c0_18, %c0_19] : memref<8x128xf32, #tpu.memory_space<vmem>>, vector<8x128xf32>
    tpu.vector_store %arg8[%c0_18, %c0_19], %21 {strides = array<i32>} : memref<8x128xf32, #tpu.memory_space<vmem>>, vector<8x128xf32>,
    return
  }
}

</mosaic_0001>

<llo_original>
// kernel: tpu_custom_call.1
$region0: #{tpu_custom_call.1}
  #allocation0 [shape = 'u32[]', space=smem, size = 0x4, offset = 0x4, fixed_abs, tag = 'smem constant byte address 0x4 - core index']
  #allocation1 [shape = 'u32[144,128]{1,0:T(1,128)}', space=vmem, size = 0x12000, scoped, tag = 'internal scratch']
  #allocation2 [shape = 's32[1]{0:T(128)S(6)}', space=smem, size = 0x200, scoped, tag = 'scoped memory for tpu_custom_call.1']
  %s0 = inlined_call_operand.<no memory space> [shape: s32[1], index: 0, kind: input, shape index: {}]
  %s1 = inlined_call_operand.hbm [shape: f32[8,128], index: 1, kind: input, shape index: {}]
  %s2 = inlined_call_operand.hbm [shape: f32[128,128], index: 2, kind: input, shape index: {}]
  %s3 = inlined_call_operand.vmem [shape: f32[1,128], index: 3, kind: input, shape index: {}]
  %s4 = inlined_call_operand.hbm [shape: f32[128,128], index: 4, kind: input, shape index: {}]
  %s5 = inlined_call_operand.vmem [shape: f32[1,128], index: 5, kind: input, shape index: {}]
  %s6 = inlined_call_operand.hbm [shape: f32[128,128], index: 6, kind: input, shape index: {}]
  %s7 = inlined_call_operand.vmem [shape: f32[1,128], index: 7, kind: input, shape index: {}]
  %s8 = inlined_call_operand.hbm [shape: f32[8,128], index: 8, kind: output, shape index: {}]
  %s9 = sld [smem:[#allocation0]]
  $region58: #{tpu_custom_call.1} parent=0
    _
  %s11 = ssub.s32 1, %s9
  %s12 = scalar_select 0, %s11, %s9
  %13 = sst [smem:[#allocation2]] %s0
  $region1: #{tpu_custom_call.1} parent=0
    #allocation3 [shape = 'u8[4096]{0}', space=vmem, size = 0x1000, scoped, tag = 'input window, operand 1, single buffered']
    #allocation4 [shape = 's32[1]{0}', space=sflag, size = 0x4, scoped, tag = 'scoped memory for tpu_custom_call.1']
    #allocation5 [shape = 's32[1]{0}', space=sflag, size = 0x4, scoped, tag = 'scoped memory for tpu_custom_call.1']
    #allocation6 [shape = 'u8[65536]{0}', space=vmem, size = 0x10000, scoped, tag = 'input window, operand 2, single buffered']
    #allocation7 [shape = 's32[1]{0}', space=sflag, size = 0x4, scoped, tag = 'scoped memory for tpu_custom_call.1']
    #allocation8 [shape = 'u8[65536]{0}', space=vmem, size = 0x10000, scoped, tag = 'input window, operand 4, single buffered']
    #allocation9 [shape = 'u8[65536]{0}', space=vmem, size = 0x10000, scoped, tag = 'input window, operand 6, single buffered']
    #allocation10 [shape = 's32[1]{0}', space=sflag, size = 0x4, scoped, tag = 'scoped memory for tpu_custom_call.1']
    #allocation11 [shape = 'u8[4096]{0}', space=vmem, size = 0x1000, scoped, tag = 'output window, operand 0, single buffered']
    %14 = vsyncpa [#allocation4], 0
    %15 = vsyncpa [#allocation7], 0
    %16 = vsyncpa [#allocation10], 0
    %17 = vsyncpa [#allocation5], 0
    // Predicated region
    $region2: #{tpu_custom_call.1} parent=1 // pred_check
      _
    $region3: #{tpu_custom_call.1} parent=1 // pred_check_branch
      %19 = sbr.rel (0) target = $region5
    $region4: #{tpu_custom_call.1} parent=1 // pred_region
      _
    $region5: #{tpu_custom_call.1} parent=1 // pred_fallthru
      _
    // Predicated region
    $region6: #{tpu_custom_call.1} parent=1 // pred_check
      _
    $region7: #{tpu_custom_call.1} parent=1 // pred_check_branch
      %21 = sbr.rel (0) target = $region9
    $region8: #{tpu_custom_call.1} parent=1 // pred_region
      %s23 = ssub.s32 128, 128
      %24 = vsyncadd [#allocation4], %s23
      %s26 = sshll.u32 [#allocation3], 4
      %s27 = int_to_ptr.vmem [resolvable:$true] %s26
      %29 = dma.hbm_to_vmem [thread:$0]  %s1, 128, %s27, [#allocation4]
    $region9: #{tpu_custom_call.1} parent=1 // pred_fallthru
      _
    // Predicated region
    $region10: #{tpu_custom_call.1} parent=1 // pred_check
      _
    $region11: #{tpu_custom_call.1} parent=1 // pred_check_branch
      %31 = sbr.rel (0) target = $region13
    $region12: #{tpu_custom_call.1} parent=1 // pred_region
      %s33 = ssub.s32 2048, 2048
      %34 = vsyncadd [#allocation7], %s33
      %s35 = sshll.u32 [#allocation6], 4
      %s36 = int_to_ptr.vmem [resolvable:$true] %s35
      %41 = dma.hbm_to_vmem [thread:$0]  %s2, 2048, %s36, [#allocation7], 128, 128, 8
    $region13: #{tpu_custom_call.1} parent=1 // pred_fallthru
      _
    // Predicated region
    $region14: #{tpu_custom_call.1} parent=1 // pred_check
      _
    $region15: #{tpu_custom_call.1} parent=1 // pred_check_branch
      %43 = sbr.rel (0) target = $region17
    $region16: #{tpu_custom_call.1} parent=1 // pred_region
      _
    $region17: #{tpu_custom_call.1} parent=1 // pred_fallthru
      _
    // Predicated region
    $region18: #{tpu_custom_call.1} parent=1 // pred_check
      _
    $region19: #{tpu_custom_call.1} parent=1 // pred_check_branch
      %45 = sbr.rel (0) target = $region21
    $region20: #{tpu_custom_call.1} parent=1 // pred_region
      %s47 = ssub.s32 2048, 2048
      %48 = vsyncadd [#allocation7], %s47
      %s49 = sshll.u32 [#allocation8], 4
      %s50 = int_to_ptr.vmem [resolvable:$true] %s49
      %55 = dma.hbm_to_vmem [thread:$0]  %s4, 2048, %s50, [#allocation7], 128, 128, 8
    $region21: #{tpu_custom_call.1} parent=1 // pred_fallthru
      _
    // Predicated region
    $region22: #{tpu_custom_call.1} parent=1 // pred_check
      _
    $region23: #{tpu_custom_call.1} parent=1 // pred_check_branch
      %57 = sbr.rel (0) target = $region25
    $region24: #{tpu_custom_call.1} parent=1 // pred_region
      _
    $region25: #{tpu_custom_call.1} parent=1 // pred_fallthru
      _
    // Predicated region
    $region26: #{tpu_custom_call.1} parent=1 // pred_check
      _
    $region27: #{tpu_custom_call.1} parent=1 // pred_check_branch
      %59 = sbr.rel (0) target = $region29
    $region28: #{tpu_custom_call.1} parent=1 // pred_region
      %s61 = ssub.s32 2048, 2048
      %62 = vsyncadd [#allocation10], %s61
      %s63 = sshll.u32 [#allocation9], 4
      %s64 = int_to_ptr.vmem [resolvable:$true] %s63
      %69 = dma.hbm_to_vmem [thread:$0]  %s6, 2048, %s64, [#allocation10], 128, 128, 8
    $region29: #{tpu_custom_call.1} parent=1 // pred_fallthru
      _
    // Predicated region
    $region30: #{tpu_custom_call.1} parent=1 // pred_check
      _
    $region31: #{tpu_custom_call.1} parent=1 // pred_check_branch
      %71 = sbr.rel (0) target = $region33
    $region32: #{tpu_custom_call.1} parent=1 // pred_region
      _
    $region33: #{tpu_custom_call.1} parent=1 // pred_fallthru
      _
    // Predicated region
    $region34: #{tpu_custom_call.1} parent=1 // pred_check
      _
    $region35: #{tpu_custom_call.1} parent=1 // pred_check_branch
      %73 = sbr.rel (0) target = $region37
    $region36: #{tpu_custom_call.1} parent=1 // pred_region
      %74 = dma.done [#allocation4], 128
    $region37: #{tpu_custom_call.1} parent=1 // pred_fallthru
      _
    // Predicated region
    $region38: #{tpu_custom_call.1} parent=1 // pred_check
      _
    $region39: #{tpu_custom_call.1} parent=1 // pred_check_branch
      %76 = sbr.rel (0) target = $region41
    $region40: #{tpu_custom_call.1} parent=1 // pred_region
      %77 = dma.done [#allocation7], 2048
    $region41: #{tpu_custom_call.1} parent=1 // pred_fallthru
      _
    // Predicated region
    $region42: #{tpu_custom_call.1} parent=1 // pred_check
      _
    $region43: #{tpu_custom_call.1} parent=1 // pred_check_branch
      %79 = sbr.rel (0) target = $region45
    $region44: #{tpu_custom_call.1} parent=1 // pred_region
      %80 = dma.done [#allocation7], 2048
    $region45: #{tpu_custom_call.1} parent=1 // pred_fallthru
      _
    // Predicated region
    $region46: #{tpu_custom_call.1} parent=1 // pred_check
      _
    $region47: #{tpu_custom_call.1} parent=1 // pred_check_branch
      %82 = sbr.rel (0) target = $region49
    $region48: #{tpu_custom_call.1} parent=1 // pred_region
      %83 = dma.done [#allocation10], 2048
    $region49: #{tpu_custom_call.1} parent=1 // pred_fallthru
      _
    %v84 = vld [vmem:[#allocation3] sm:$0xff]
    %v85 = vld [vmem:[#allocation6] sm:$0xff]
    %v86 = vld [vmem:[#allocation6 + $0x8] sm:$0xff]
    %v87 = vld [vmem:[#allocation6 + $0x10] sm:$0xff]
    %v88 = vld [vmem:[#allocation6 + $0x18] sm:$0xff]
    %v89 = vld [vmem:[#allocation6 + $0x20] sm:$0xff]
    %v90 = vld [vmem:[#allocation6 + $0x28] sm:$0xff]
    %v91 = vld [vmem:[#allocation6 + $0x30] sm:$0xff]
    %v92 = vld [vmem:[#allocation6 + $0x38] sm:$0xff]
    %v93 = vld [vmem:[#allocation6 + $0x40] sm:$0xff]
    %v94 = vld [vmem:[#allocation6 + $0x48] sm:$0xff]
    %v95 = vld [vmem:[#allocation6 + $0x50] sm:$0xff]
    %v96 = vld [vmem:[#allocation6 + $0x58] sm:$0xff]
    %v97 = vld [vmem:[#allocation6 + $0x60] sm:$0xff]
    %v98 = vld [vmem:[#allocation6 + $0x68] sm:$0xff]
    %v99 = vld [vmem:[#allocation6 + $0x70] sm:$0xff]
    %v100 = vld [vmem:[#allocation6 + $0x78] sm:$0xff]
    %v101 = vld [vmem:[%s3] sm:$0x1]
    %v103 = vlaneseq
    %v104 = vshrl.u32 %v103, 7
    %v105 = vsub.s32 0, %v104
    %v106 = vrot.slane %v101, %v105
    %108 = vmatprep.subr.mxu0 0.0
    %109 = vmatpush1.msra.mxu0 %v85
    %110 = vmatprep.subr.mxu0 0.0
    %111 = vmatpush1.msra.mxu0 %v86
    %112 = vmatprep.subr.mxu0 0.0
    %113 = vmatpush1.msra.mxu0 %v87
    %114 = vmatprep.subr.mxu0 0.0
    %115 = vmatpush1.msra.mxu0 %v88
    %116 = vmatprep.subr.mxu0 0.0
    %117 = vmatpush1.msra.mxu0 %v89
    %118 = vmatprep.subr.mxu0 0.0
    %119 = vmatpush1.msra.mxu0 %v90
    %120 = vmatprep.subr.mxu0 0.0
    %121 = vmatpush1.msra.mxu0 %v91
    %122 = vmatprep.subr.mxu0 0.0
    %123 = vmatpush1.msra.mxu0 %v92
    %124 = vmatprep.subr.mxu0 0.0
    %125 = vmatpush1.msra.mxu0 %v93
    %126 = vmatprep.subr.mxu0 0.0
    %127 = vmatpush1.msra.mxu0 %v94
    %128 = vmatprep.subr.mxu0 0.0
    %129 = vmatpush1.msra.mxu0 %v95
    %130 = vmatprep.subr.mxu0 0.0
    %131 = vmatpush1.msra.mxu0 %v96
    %132 = vmatprep.subr.mxu0 0.0
    %133 = vmatpush1.msra.mxu0 %v97
    %134 = vmatprep.subr.mxu0 0.0
    %135 = vmatpush1.msra.mxu0 %v98
    %136 = vmatprep.subr.mxu0 0.0
    %137 = vmatpush1.msra.mxu0 %v99
    %138 = vmatprep.subr.mxu0 0.0
    %139 = vmatpush1.msra.mxu0 %v100
    %140 = vmatprep.subr.mxu0 0.0
    %141 = vmatpush1.msra.mxu0 0.0
    %142 = vmatprep.subr.mxu0 0.0
    %143 = vmatpush1.msra.mxu0 0.0
    %144 = vmatprep.subr.mxu0 0.0
    %145 = vmatpush1.msra.mxu0 0.0
    %146 = vmatprep.subr.mxu0 0.0
    %147 = vmatpush1.msra.mxu0 0.0
    %148 = vmatprep.subr.mxu0 0.0
    %149 = vmatpush1.msra.mxu0 0.0
    %150 = vmatprep.subr.mxu0 0.0
    %151 = vmatpush1.msra.mxu0 0.0
    %152 = vmatprep.subr.mxu0 0.0
    %153 = vmatpush1.msra.mxu0 0.0
    %154 = vmatprep.subr.mxu0 0.0
    %155 = vmatpush1.msra.mxu0 0.0
    %156 = vmatprep.subr.mxu0 0.0
    %157 = vmatpush1.msra.mxu0 0.0
    %158 = vmatprep.subr.mxu0 0.0
    %159 = vmatpush1.msra.mxu0 0.0
    %160 = vmatprep.subr.mxu0 0.0
    %161 = vmatpush1.msra.mxu0 0.0
    %162 = vmatprep.subr.mxu0 0.0
    %163 = vmatpush1.msra.mxu0 0.0
    %164 = vmatprep.subr.mxu0 0.0
    %165 = vmatpush1.msra.mxu0 0.0
    %166 = vmatprep.subr.mxu0 0.0
    %167 = vmatpush1.msra.mxu0 0.0
    %168 = vmatprep.subr.mxu0 0.0
    %169 = vmatpush1.msra.mxu0 0.0
    %170 = vmatprep.subr.mxu0 0.0
    %171 = vmatpush1.msra.mxu0 0.0
    %172 = vmatprep.mubr.f32.mxu0 0.0
    %173 = vmatmul.mubr.f32.gmra.mrb[0].mxu0 %v84
    %v174 = vpop.f32.mrb[0].mxu0
    %v175 = vadd.f32 %v106, %v174
    %v176 = vpop.f32.mrb[0].mxu0
    %177 = vdwg.mxu0
    %v178 = vmax.f32 %v175, 0.0
    %v179 = vld [vmem:[#allocation8] sm:$0xff]
    %v180 = vld [vmem:[#allocation8 + $0x8] sm:$0xff]
    %v181 = vld [vmem:[#allocation8 + $0x10] sm:$0xff]
    %v182 = vld [vmem:[#allocation8 + $0x18] sm:$0xff]
    %v183 = vld [vmem:[#allocation8 + $0x20] sm:$0xff]
    %v184 = vld [vmem:[#allocation8 + $0x28] sm:$0xff]
    %v185 = vld [vmem:[#allocation8 + $0x30] sm:$0xff]
    %v186 = vld [vmem:[#allocation8 + $0x38] sm:$0xff]
    %v187 = vld [vmem:[#allocation8 + $0x40] sm:$0xff]
    %v188 = vld [vmem:[#allocation8 + $0x48] sm:$0xff]
    %v189 = vld [vmem:[#allocation8 + $0x50] sm:$0xff]
    %v190 = vld [vmem:[#allocation8 + $0x58] sm:$0xff]
    %v191 = vld [vmem:[#allocation8 + $0x60] sm:$0xff]
    %v192 = vld [vmem:[#allocation8 + $0x68] sm:$0xff]
    %v193 = vld [vmem:[#allocation8 + $0x70] sm:$0xff]
    %v194 = vld [vmem:[#allocation8 + $0x78] sm:$0xff]
    %v195 = vld [vmem:[%s5] sm:$0x1]
    %v197 = vlaneseq
    %v198 = vshrl.u32 %v197, 7
    %v199 = vsub.s32 0, %v198
    %v200 = vrot.slane %v195, %v199
    %202 = vmatprep.subr.mxu0 0.0
    %203 = vmatpush1.msra.mxu0 %v179
    %204 = vmatprep.subr.mxu0 0.0
    %205 = vmatpush1.msra.mxu0 %v180
    %206 = vmatprep.subr.mxu0 0.0
    %207 = vmatpush1.msra.mxu0 %v181
    %208 = vmatprep.subr.mxu0 0.0
    %209 = vmatpush1.msra.mxu0 %v182
    %210 = vmatprep.subr.mxu0 0.0
    %211 = vmatpush1.msra.mxu0 %v183
    %212 = vmatprep.subr.mxu0 0.0
    %213 = vmatpush1.msra.mxu0 %v184
    %214 = vmatprep.subr.mxu0 0.0
    %215 = vmatpush1.msra.mxu0 %v185
    %216 = vmatprep.subr.mxu0 0.0
    %217 = vmatpush1.msra.mxu0 %v186
    %218 = vmatprep.subr.mxu0 0.0
    %219 = vmatpush1.msra.mxu0 %v187
    %220 = vmatprep.subr.mxu0 0.0
    %221 = vmatpush1.msra.mxu0 %v188
    %222 = vmatprep.subr.mxu0 0.0
    %223 = vmatpush1.msra.mxu0 %v189
    %224 = vmatprep.subr.mxu0 0.0
    %225 = vmatpush1.msra.mxu0 %v190
    %226 = vmatprep.subr.mxu0 0.0
    %227 = vmatpush1.msra.mxu0 %v191
    %228 = vmatprep.subr.mxu0 0.0
    %229 = vmatpush1.msra.mxu0 %v192
    %230 = vmatprep.subr.mxu0 0.0
    %231 = vmatpush1.msra.mxu0 %v193
    %232 = vmatprep.subr.mxu0 0.0
    %233 = vmatpush1.msra.mxu0 %v194
    %234 = vmatprep.subr.mxu0 0.0
    %235 = vmatpush1.msra.mxu0 0.0
    %236 = vmatprep.subr.mxu0 0.0
    %237 = vmatpush1.msra.mxu0 0.0
    %238 = vmatprep.subr.mxu0 0.0
    %239 = vmatpush1.msra.mxu0 0.0
    %240 = vmatprep.subr.mxu0 0.0
    %241 = vmatpush1.msra.mxu0 0.0
    %242 = vmatprep.subr.mxu0 0.0
    %243 = vmatpush1.msra.mxu0 0.0
    %244 = vmatprep.subr.mxu0 0.0
    %245 = vmatpush1.msra.mxu0 0.0
    %246 = vmatprep.subr.mxu0 0.0
    %247 = vmatpush1.msra.mxu0 0.0
    %248 = vmatprep.subr.mxu0 0.0
    %249 = vmatpush1.msra.mxu0 0.0
    %250 = vmatprep.subr.mxu0 0.0
    %251 = vmatpush1.msra.mxu0 0.0
    %252 = vmatprep.subr.mxu0 0.0
    %253 = vmatpush1.msra.mxu0 0.0
    %254 = vmatprep.subr.mxu0 0.0
    %255 = vmatpush1.msra.mxu0 0.0
    %256 = vmatprep.subr.mxu0 0.0
    %257 = vmatpush1.msra.mxu0 0.0
    %258 = vmatprep.subr.mxu0 0.0
    %259 = vmatpush1.msra.mxu0 0.0
    %260 = vmatprep.subr.mxu0 0.0
    %261 = vmatpush1.msra.mxu0 0.0
    %262 = vmatprep.subr.mxu0 0.0
    %263 = vmatpush1.msra.mxu0 0.0
    %264 = vmatprep.subr.mxu0 0.0
    %265 = vmatpush1.msra.mxu0 0.0
    %266 = vmatprep.mubr.f32.mxu0 0.0
    %267 = vmatmul.mubr.f32.gmra.mrb[0].mxu0 %v178
    %v268 = vpop.f32.mrb[0].mxu0
    %v269 = vadd.f32 %v200, %v268
    %v270 = vpop.f32.mrb[0].mxu0
    %271 = vdwg.mxu0
    %v272 = vmax.f32 %v269, 0.0
    %v273 = vld [vmem:[#allocation9] sm:$0xff]
    %v274 = vld [vmem:[#allocation9 + $0x8] sm:$0xff]
    %v275 = vld [vmem:[#allocation9 + $0x10] sm:$0xff]
    %v276 = vld [vmem:[#allocation9 + $0x18] sm:$0xff]
    %v277 = vld [vmem:[#allocation9 + $0x20] sm:$0xff]
    %v278 = vld [vmem:[#allocation9 + $0x28] sm:$0xff]
    %v279 = vld [vmem:[#allocation9 + $0x30] sm:$0xff]
    %v280 = vld [vmem:[#allocation9 + $0x38] sm:$0xff]
    %v281 = vld [vmem:[#allocation9 + $0x40] sm:$0xff]
    %v282 = vld [vmem:[#allocation9 + $0x48] sm:$0xff]
    %v283 = vld [vmem:[#allocation9 + $0x50] sm:$0xff]
    %v284 = vld [vmem:[#allocation9 + $0x58] sm:$0xff]
    %v285 = vld [vmem:[#allocation9 + $0x60] sm:$0xff]
    %v286 = vld [vmem:[#allocation9 + $0x68] sm:$0xff]
    %v287 = vld [vmem:[#allocation9 + $0x70] sm:$0xff]
    %v288 = vld [vmem:[#allocation9 + $0x78] sm:$0xff]
    %v289 = vld [vmem:[%s7] sm:$0x1]
    %v291 = vlaneseq
    %v292 = vshrl.u32 %v291, 7
    %v293 = vsub.s32 0, %v292
    %v294 = vrot.slane %v289, %v293
    %296 = vmatprep.subr.mxu0 0.0
    %297 = vmatpush1.msra.mxu0 %v273
    %298 = vmatprep.subr.mxu0 0.0
    %299 = vmatpush1.msra.mxu0 %v274
    %300 = vmatprep.subr.mxu0 0.0
    %301 = vmatpush1.msra.mxu0 %v275
    %302 = vmatprep.subr.mxu0 0.0
    %303 = vmatpush1.msra.mxu0 %v276
    %304 = vmatprep.subr.mxu0 0.0
    %305 = vmatpush1.msra.mxu0 %v277
    %306 = vmatprep.subr.mxu0 0.0
    %307 = vmatpush1.msra.mxu0 %v278
    %308 = vmatprep.subr.mxu0 0.0
    %309 = vmatpush1.msra.mxu0 %v279
    %310 = vmatprep.subr.mxu0 0.0
    %311 = vmatpush1.msra.mxu0 %v280
    %312 = vmatprep.subr.mxu0 0.0
    %313 = vmatpush1.msra.mxu0 %v281
    %314 = vmatprep.subr.mxu0 0.0
    %315 = vmatpush1.msra.mxu0 %v282
    %316 = vmatprep.subr.mxu0 0.0
    %317 = vmatpush1.msra.mxu0 %v283
    %318 = vmatprep.subr.mxu0 0.0
    %319 = vmatpush1.msra.mxu0 %v284
    %320 = vmatprep.subr.mxu0 0.0
    %321 = vmatpush1.msra.mxu0 %v285
    %322 = vmatprep.subr.mxu0 0.0
    %323 = vmatpush1.msra.mxu0 %v286
    %324 = vmatprep.subr.mxu0 0.0
    %325 = vmatpush1.msra.mxu0 %v287
    %326 = vmatprep.subr.mxu0 0.0
    %327 = vmatpush1.msra.mxu0 %v288
    %328 = vmatprep.subr.mxu0 0.0
    %329 = vmatpush1.msra.mxu0 0.0
    %330 = vmatprep.subr.mxu0 0.0
    %331 = vmatpush1.msra.mxu0 0.0
    %332 = vmatprep.subr.mxu0 0.0
    %333 = vmatpush1.msra.mxu0 0.0
    %334 = vmatprep.subr.mxu0 0.0
    %335 = vmatpush1.msra.mxu0 0.0
    %336 = vmatprep.subr.mxu0 0.0
    %337 = vmatpush1.msra.mxu0 0.0
    %338 = vmatprep.subr.mxu0 0.0
    %339 = vmatpush1.msra.mxu0 0.0
    %340 = vmatprep.subr.mxu0 0.0
    %341 = vmatpush1.msra.mxu0 0.0
    %342 = vmatprep.subr.mxu0 0.0
    %343 = vmatpush1.msra.mxu0 0.0
    %344 = vmatprep.subr.mxu0 0.0
    %345 = vmatpush1.msra.mxu0 0.0
    %346 = vmatprep.subr.mxu0 0.0
    %347 = vmatpush1.msra.mxu0 0.0
    %348 = vmatprep.subr.mxu0 0.0
    %349 = vmatpush1.msra.mxu0 0.0
    %350 = vmatprep.subr.mxu0 0.0
    %351 = vmatpush1.msra.mxu0 0.0
    %352 = vmatprep.subr.mxu0 0.0
    %353 = vmatpush1.msra.mxu0 0.0
    %354 = vmatprep.subr.mxu0 0.0
    %355 = vmatpush1.msra.mxu0 0.0
    %356 = vmatprep.subr.mxu0 0.0
    %357 = vmatpush1.msra.mxu0 0.0
    %358 = vmatprep.subr.mxu0 0.0
    %359 = vmatpush1.msra.mxu0 0.0
    %360 = vmatprep.mubr.f32.mxu0 0.0
    %361 = vmatmul.mubr.f32.gmra.mrb[0].mxu0 %v272
    %v362 = vpop.f32.mrb[0].mxu0
    %v363 = vadd.f32 %v294, %v362
    %v364 = vpop.f32.mrb[0].mxu0
    %365 = vdwg.mxu0
    %v366 = vmax.f32 %v363, 0.0
    %367 = vst [vmem:[#allocation11] sm:$0xff] %v366
    // Predicated region
    $region50: #{tpu_custom_call.1} parent=1 // pred_check
      _
    $region51: #{tpu_custom_call.1} parent=1 // pred_check_branch
      %369 = sbr.rel (0) target = $region53
    $region52: #{tpu_custom_call.1} parent=1 // pred_region
      %s371 = ssub.s32 128, 128
      %372 = vsyncadd [#allocation5], %s371
      %s374 = sshll.u32 [#allocation11], 4
      %s375 = int_to_ptr.vmem [resolvable:$true] %s374
      %377 = dma.vmem_to_hbm [thread:$0]  %s375, 128, %s8, [#allocation5]
    $region53: #{tpu_custom_call.1} parent=1 // pred_fallthru
      _
    // Predicated region
    $region54: #{tpu_custom_call.1} parent=1 // pred_check
      _
    $region55: #{tpu_custom_call.1} parent=1 // pred_check_branch
      %379 = sbr.rel (0) target = $region57
    $region56: #{tpu_custom_call.1} parent=1 // pred_region
      %380 = dma.done [#allocation5], 128
    $region57: #{tpu_custom_call.1} parent=1 // pred_fallthru
      _
    %381 = vsyncpa [#allocation4], 1
    %382 = vsyncpa [#allocation7], 1
    %383 = vsyncpa [#allocation10], 1
    %384 = vsyncpa [#allocation5], 1

</llo_original>
